<compile_context>
chip_gen: v6e
topology: v6e:2x2x1
jax: 0.10.0
libtpu: 0.0.40
codegen_flags: <defaults>
</compile_context>

<pallas_src>
import functools

import jax
import jax.numpy as jnp
from jax.experimental import pallas as pl
from jax.experimental.pallas import tpu as pltpu


def conv3x3_kernel(x_ref, w_ref, m_ref, o_ref, slab_ref, *, img_w):
    """One batch element per grid step.

    x_ref:    (1, C, HW)   input, spatial flattened onto the lane axis
    w_ref:    (E, 9*C)     weight, column order (kh*3 + kw)*C + c
    m_ref:    (9, HW)      per-tap boundary masks (1.0 = valid, 0.0 = pad)
    o_ref:    (1, E, HW)   output (lane-dense last dim)
    slab_ref: (9*C, HW)    im2col scratch slab in VMEM (input dtype)
    """
    C = x_ref.shape[1]
    HW = x_ref.shape[2]

    x = x_ref[0]                                       # (C, HW) resident tile

    # Build the im2col slab: each 3x3 tap is an XLU lane rotation of the
    # resident tile, zeroed at the image boundary by a precomputed mask.
    # (shift/offsets are Python ints -> static slices, static roll amounts)
    for kh in range(3):
        for kw in range(3):
            t = kh * 3 + kw
            shift = (-((kh - 1) * img_w + (kw - 1))) % HW
            shifted = pltpu.roll(x, shift, axis=1) if shift else x
            mask = m_ref[pl.ds(t, 1), :]               # (1, HW), broadcasts over C
            slab_ref[pl.ds(t * C, C), :] = (shifted * mask).astype(slab_ref.dtype)

    # Single MXU pass per batch element: (E, 9C) @ (9C, HW), f32 accumulation.
    out = jnp.dot(w_ref[...], slab_ref[...], preferred_element_type=jnp.float32)
    o_ref[0] = out.astype(o_ref.dtype)


def overlap_patch_embed(x_nchw, weight_oihw):
    """Forward of OverlapPatchEmbed (nn.Conv2d 3x3, stride 1, pad 1, no bias).

    x_nchw:      (N, C, H, W)   PyTorch input layout
    weight_oihw: (E, C, 3, 3)   PyTorch Conv2d weight layout
    returns:     (N, E, H, W)
    For non-f32 inputs the output is cast back to the input dtype after f32
    accumulation (matches typical PyTorch mixed-precision behavior).
    """
    N, C, H, W = x_nchw.shape
    E = weight_oihw.shape[0]
    HW = H * W

    # Free reshape only — no transpose / pad of the activation in HBM.
    x_flat = x_nchw.reshape(N, C, HW)                                # (N, C, HW)
    # Tiny weight relayout: (E, C, 3, 3) -> (E, 9*C), column = (kh*3+kw)*C + c.
    w2 = jnp.transpose(weight_oihw, (0, 2, 3, 1)).reshape(E, 9 * C)

    # Per-tap boundary masks over the flattened spatial axis.
    h_idx = jnp.arange(HW, dtype=jnp.int32) // W
    w_idx = jnp.arange(HW, dtype=jnp.int32) % W
    masks = []
    for kh in range(3):
        for kw in range(3):
            dh, dw = kh - 1, kw - 1
            valid = ((h_idx + dh >= 0) & (h_idx + dh < H) &
                     (w_idx + dw >= 0) & (w_idx + dw < W))
            masks.append(valid)
    masks = jnp.stack(masks, axis=0).astype(x_nchw.dtype)            # (9, HW)

    # TODO(synk): for large images (e.g. 224x224 on v7x's 64 MiB VMEM) add a
    # spatial H-tile grid axis with a +/-1-row halo instead of whole-image blocks.
    out_flat = pl.pallas_call(
        functools.partial(conv3x3_kernel, img_w=W),
        out_shape=jax.ShapeDtypeStruct((N, E, HW), x_nchw.dtype),
        grid=(N,),
        in_specs=[
            pl.BlockSpec((1, C, HW), lambda n: (n, 0, 0)),
            pl.BlockSpec((E, 9 * C), lambda n: (0, 0)),   # resident (constant block)
            pl.BlockSpec((9, HW), lambda n: (0, 0)),      # resident (constant block)
        ],
        out_specs=pl.BlockSpec((1, E, HW), lambda n: (n, 0, 0)),
        scratch_shapes=[pltpu.VMEM((9 * C, HW), x_nchw.dtype)],
        compiler_params=pltpu.CompilerParams(
            dimension_semantics=("parallel",),
            vmem_limit_bytes=32 * 1024 * 1024),
    )(x_flat, w2, masks)

    return out_flat.reshape(N, E, H, W)


if __name__ == "__main__":
    # Small shapes consistent with the module: in_c=4, embed_dim=32.
    N, C, H, W = 2, 4, 16, 16
    E = 32

    key = jax.random.PRNGKey(0)
    kx, kw = jax.random.split(key)
    x = jax.random.normal(kx, (N, C, H, W), dtype=jnp.float32)
    # Deterministic Conv2d-like init (kaiming-uniform-ish scale), bias=False.
    fan_in = C * 3 * 3
    bound = 1.0 / (fan_in ** 0.5)
    weight = jax.random.uniform(kw, (E, C, 3, 3), dtype=jnp.float32,
                                minval=-bound, maxval=bound)

    out = overlap_patch_embed(x, weight)
    out = jax.block_until_ready(out)

    # Reference check against XLA's conv (same semantics as nn.Conv2d).
    ref = jax.lax.conv_general_dilated(
        x, weight, window_strides=(1, 1), padding=((1, 1), (1, 1)),
        dimension_numbers=("NCHW", "OIHW", "NCHW"))
    assert out.shape == (N, E, H, W)
    assert jnp.allclose(out, ref, atol=1e-4, rtol=1e-4), \
        float(jnp.max(jnp.abs(out - ref)))

    print("KERNEL_OK")
</pallas_src>

<mosaic_0001>
module attributes {stable_mosaic.version = 11 : i64} {
  func.func @conv3x3_kernel(%arg0: i32, %arg1: memref<1x4x256xf32, #tpu.memory_space<vmem>>, %arg2: memref<32x36xf32, #tpu.memory_space<vmem>>, %arg3: memref<9x256xf32, #tpu.memory_space<vmem>>, %arg4: memref<1x32x256xf32, #tpu.memory_space<vmem>>, %arg5: memref<36x256xf32, #tpu.memory_space<vmem>>) attributes {dimension_semantics = [#tpu.dimension_semantics<parallel>], iteration_bounds = array<i64: 2>, scalar_prefetch = 0 : i64, scratch_operands = 1 : i64, tpu.core_type = #tpu.core_type<tc>, window_params = [{transform_indices = @transform_0, window_bounds = array<i64: 1, 4, 256>}, {pipeline_mode = #tpu.pipeline_mode<synchronous>, transform_indices = @transform_1, window_bounds = array<i64: 32, 36>}, {pipeline_mode = #tpu.pipeline_mode<synchronous>, transform_indices = @transform_2, window_bounds = array<i64: 9, 256>}, {transform_indices = @transform_3, window_bounds = array<i64: 1, 32, 256>}]} {
    %c0 = arith.constant 0 : index
    %c0_0 = arith.constant 0 : index
    %c0_1 = arith.constant 0 : index
    %0 = vector.load %arg1[%c0, %c0_0, %c0_1] : memref<1x4x256xf32, #tpu.memory_space<vmem>>, vector<1x4x256xf32>
    %1 = vector.shape_cast %0 : vector<1x4x256xf32> to vector<4x256xf32>
    %c17_i32 = arith.constant 17 : i32
    %2 = tpu.dynamic_rotate %1 by %c17_i32 dim 1 : vector<4x256xf32>, i32 -> vector<4x256xf32>
    %c0_2 = arith.constant 0 : index
    %c0_3 = arith.constant 0 : index
    %3 = vector.load %arg3[%c0_2, %c0_3] : memref<9x256xf32, #tpu.memory_space<vmem>>, vector<1x256xf32>
    %4 = vector.broadcast %3 : vector<1x256xf32> to vector<4x256xf32>
    %5 = arith.mulf %2, %4 : vector<4x256xf32>
    %c0_4 = arith.constant 0 : index
    %c0_5 = arith.constant 0 : index
    %6 = vector.load %arg5[%c0_4, %c0_5] : memref<36x256xf32, #tpu.memory_space<vmem>>, vector<4x256xf32>
    tpu.vector_store %arg5[%c0_4, %c0_5], %5 {strides = array<i32>} : memref<36x256xf32, #tpu.memory_space<vmem>>, vector<4x256xf32>,
    %c16_i32 = arith.constant 16 : i32
    %7 = tpu.dynamic_rotate %1 by %c16_i32 dim 1 : vector<4x256xf32>, i32 -> vector<4x256xf32>
    %c1 = arith.constant 1 : index
    %c0_6 = arith.constant 0 : index
    %8 = vector.load %arg3[%c1, %c0_6] : memref<9x256xf32, #tpu.memory_space<vmem>>, vector<1x256xf32>
    %9 = vector.broadcast %8 : vector<1x256xf32> to vector<4x256xf32>
    %10 = arith.mulf %7, %9 : vector<4x256xf32>
    %c4 = arith.constant 4 : index
    %c0_7 = arith.constant 0 : index
    %11 = vector.load %arg5[%c4, %c0_7] : memref<36x256xf32, #tpu.memory_space<vmem>>, vector<4x256xf32>
    tpu.vector_store %arg5[%c4, %c0_7], %10 {strides = array<i32>} : memref<36x256xf32, #tpu.memory_space<vmem>>, vector<4x256xf32>,
    %c15_i32 = arith.constant 15 : i32
    %12 = tpu.dynamic_rotate %1 by %c15_i32 dim 1 : vector<4x256xf32>, i32 -> vector<4x256xf32>
    %c2 = arith.constant 2 : index
    %c0_8 = arith.constant 0 : index
    %13 = vector.load %arg3[%c2, %c0_8] : memref<9x256xf32, #tpu.memory_space<vmem>>, vector<1x256xf32>
    %14 = vector.broadcast %13 : vector<1x256xf32> to vector<4x256xf32>
    %15 = arith.mulf %12, %14 : vector<4x256xf32>
    %c8 = arith.constant 8 : index
    %c0_9 = arith.constant 0 : index
    %16 = vector.load %arg5[%c8, %c0_9] : memref<36x256xf32, #tpu.memory_space<vmem>>, vector<4x256xf32>
    tpu.vector_store %arg5[%c8, %c0_9], %15 {strides = array<i32>} : memref<36x256xf32, #tpu.memory_space<vmem>>, vector<4x256xf32>,
    %c1_i32 = arith.constant 1 : i32
    %17 = tpu.dynamic_rotate %1 by %c1_i32 dim 1 : vector<4x256xf32>, i32 -> vector<4x256xf32>
    %c3 = arith.constant 3 : index
    %c0_10 = arith.constant 0 : index
    %18 = vector.load %arg3[%c3, %c0_10] : memref<9x256xf32, #tpu.memory_space<vmem>>, vector<1x256xf32>
    %19 = vector.broadcast %18 : vector<1x256xf32> to vector<4x256xf32>
    %20 = arith.mulf %17, %19 : vector<4x256xf32>
    %c12 = arith.constant 12 : index
    %c0_11 = arith.constant 0 : index
    %21 = vector.load %arg5[%c12, %c0_11] : memref<36x256xf32, #tpu.memory_space<vmem>>, vector<4x256xf32>
    tpu.vector_store %arg5[%c12, %c0_11], %20 {strides = array<i32>} : memref<36x256xf32, #tpu.memory_space<vmem>>, vector<4x256xf32>,
    %c4_12 = arith.constant 4 : index
    %c0_13 = arith.constant 0 : index
    %22 = vector.load %arg3[%c4_12, %c0_13] : memref<9x256xf32, #tpu.memory_space<vmem>>, vector<1x256xf32>
    %23 = vector.broadcast %22 : vector<1x256xf32> to vector<4x256xf32>
    %24 = arith.mulf %1, %23 : vector<4x256xf32>
    %c16 = arith.constant 16 : index
    %c0_14 = arith.constant 0 : index
    %25 = vector.load %arg5[%c16, %c0_14] : memref<36x256xf32, #tpu.memory_space<vmem>>, vector<4x256xf32>
    tpu.vector_store %arg5[%c16, %c0_14], %24 {strides = array<i32>} : memref<36x256xf32, #tpu.memory_space<vmem>>, vector<4x256xf32>,
    %c255_i32 = arith.constant 255 : i32
    %26 = tpu.dynamic_rotate %1 by %c255_i32 dim 1 : vector<4x256xf32>, i32 -> vector<4x256xf32>
    %c5 = arith.constant 5 : index
    %c0_15 = arith.constant 0 : index
    %27 = vector.load %arg3[%c5, %c0_15] : memref<9x256xf32, #tpu.memory_space<vmem>>, vector<1x256xf32>
    %28 = vector.broadcast %27 : vector<1x256xf32> to vector<4x256xf32>
    %29 = arith.mulf %26, %28 : vector<4x256xf32>
    %c20 = arith.constant 20 : index
    %c0_16 = arith.constant 0 : index
    %30 = vector.load %arg5[%c20, %c0_16] : memref<36x256xf32, #tpu.memory_space<vmem>>, vector<4x256xf32>
    tpu.vector_store %arg5[%c20, %c0_16], %29 {strides = array<i32>} : memref<36x256xf32, #tpu.memory_space<vmem>>, vector<4x256xf32>,
    %c241_i32 = arith.constant 241 : i32
    %31 = tpu.dynamic_rotate %1 by %c241_i32 dim 1 : vector<4x256xf32>, i32 -> vector<4x256xf32>
    %c6 = arith.constant 6 : index
    %c0_17 = arith.constant 0 : index
    %32 = vector.load %arg3[%c6, %c0_17] : memref<9x256xf32, #tpu.memory_space<vmem>>, vector<1x256xf32>
    %33 = vector.broadcast %32 : vector<1x256xf32> to vector<4x256xf32>
    %34 = arith.mulf %31, %33 : vector<4x256xf32>
    %c24 = arith.constant 24 : index
    %c0_18 = arith.constant 0 : index
    %35 = vector.load %arg5[%c24, %c0_18] : memref<36x256xf32, #tpu.memory_space<vmem>>, vector<4x256xf32>
    tpu.vector_store %arg5[%c24, %c0_18], %34 {strides = array<i32>} : memref<36x256xf32, #tpu.memory_space<vmem>>, vector<4x256xf32>,
    %c240_i32 = arith.constant 240 : i32
    %36 = tpu.dynamic_rotate %1 by %c240_i32 dim 1 : vector<4x256xf32>, i32 -> vector<4x256xf32>
    %c7 = arith.constant 7 : index
    %c0_19 = arith.constant 0 : index
    %37 = vector.load %arg3[%c7, %c0_19] : memref<9x256xf32, #tpu.memory_space<vmem>>, vector<1x256xf32>
    %38 = vector.broadcast %37 : vector<1x256xf32> to vector<4x256xf32>
    %39 = arith.mulf %36, %38 : vector<4x256xf32>
    %c28 = arith.constant 28 : index
    %c0_20 = arith.constant 0 : index
    %40 = vector.load %arg5[%c28, %c0_20] : memref<36x256xf32, #tpu.memory_space<vmem>>, vector<4x256xf32>
    tpu.vector_store %arg5[%c28, %c0_20], %39 {strides = array<i32>} : memref<36x256xf32, #tpu.memory_space<vmem>>, vector<4x256xf32>,
    %c239_i32 = arith.constant 239 : i32
    %41 = tpu.dynamic_rotate %1 by %c239_i32 dim 1 : vector<4x256xf32>, i32 -> vector<4x256xf32>
    %c8_21 = arith.constant 8 : index
    %c0_22 = arith.constant 0 : index
    %42 = vector.load %arg3[%c8_21, %c0_22] : memref<9x256xf32, #tpu.memory_space<vmem>>, vector<1x256xf32>
    %43 = vector.broadcast %42 : vector<1x256xf32> to vector<4x256xf32>
    %44 = arith.mulf %41, %43 : vector<4x256xf32>
    %c32 = arith.constant 32 : index
    %c0_23 = arith.constant 0 : index
    %45 = vector.load %arg5[%c32, %c0_23] : memref<36x256xf32, #tpu.memory_space<vmem>>, vector<4x256xf32>
    tpu.vector_store %arg5[%c32, %c0_23], %44 {strides = array<i32>} : memref<36x256xf32, #tpu.memory_space<vmem>>, vector<4x256xf32>,
    %c0_24 = arith.constant 0 : index
    %c0_25 = arith.constant 0 : index
    %46 = vector.load %arg2[%c0_24, %c0_25] : memref<32x36xf32, #tpu.memory_space<vmem>>, vector<32x36xf32>
    %c0_26 = arith.constant 0 : index
    %c0_27 = arith.constant 0 : index
    %47 = vector.load %arg5[%c0_26, %c0_27] : memref<36x256xf32, #tpu.memory_space<vmem>>, vector<36x256xf32>
    %cst = arith.constant dense<0.000000e+00> : vector<32x256xf32>
    %48 = tpu.matmul %46, %47, %cst {dimension_numbers = #tpu.dot_dimension_numbers<[1], [0], [0], [1], [0, 0, 1, 1], [], []>} : vector<32x36xf32>, vector<36x256xf32>, vector<32x256xf32> -> vector<32x256xf32>
    %c0_28 = arith.constant 0 : index
    %c0_29 = arith.constant 0 : index
    %c0_30 = arith.constant 0 : index
    %49 = vector.load %arg4[%c0_28, %c0_29, %c0_30] : memref<1x32x256xf32, #tpu.memory_space<vmem>>, vector<1x32x256xf32>
    %50 = vector.shape_cast %49 : vector<1x32x256xf32> to vector<32x256xf32>
    %51 = vector.shape_cast %48 : vector<32x256xf32> to vector<1x32x256xf32>
    tpu.vector_store %arg4[%c0_28, %c0_29, %c0_30], %51 {strides = array<i32>} : memref<1x32x256xf32, #tpu.memory_space<vmem>>, vector<1x32x256xf32>,
    return
  }
  func.func @transform_0(%arg0: i32) -> (i32, i32, i32) {
    %c0_i32 = arith.constant 0 : i32
    %c0_i32_0 = arith.constant 0 : i32
    %c0_i32_1 = arith.constant 0 : i32
    return %arg0, %c0_i32, %c0_i32_0 : i32, i32, i32
  }
  func.func @transform_1(%arg0: i32) -> (i32, i32) {
    %c0_i32 = arith.constant 0 : i32
    %c0_i32_0 = arith.constant 0 : i32
    %c0_i32_1 = arith.constant 0 : i32
    return %c0_i32, %c0_i32_0 : i32, i32
  }
  func.func @transform_2(%arg0: i32) -> (i32, i32) {
    %c0_i32 = arith.constant 0 : i32
    %c0_i32_0 = arith.constant 0 : i32
    %c0_i32_1 = arith.constant 0 : i32
    return %c0_i32, %c0_i32_0 : i32, i32
  }
  func.func @transform_3(%arg0: i32) -> (i32, i32, i32) {
    %c0_i32 = arith.constant 0 : i32
    %c0_i32_0 = arith.constant 0 : i32
    %c0_i32_1 = arith.constant 0 : i32
    return %arg0, %c0_i32, %c0_i32_0 : i32, i32, i32
  }
}

</mosaic_0001>

<llo_original>
// kernel: tpu_custom_call.1
$region0: #{tpu_custom_call.1}
  #allocation0 [shape = 'u32[]', space=smem, size = 0x4, offset = 0x4, fixed_abs, tag = 'smem constant byte address 0x4 - core index']
  #allocation1 [shape = 'u32[144,128]{1,0:T(1,128)}', space=vmem, size = 0x12000, scoped, tag = 'internal scratch']
  #allocation2 [shape = 'f32[36,256]{1,0:T(8,128)}', space=vmem, size = 0xa000, scoped, tag = 'scratch operand']
  %s0 = inlined_call_operand.hbm [shape: f32[2,4,256], index: 0, kind: input, shape index: {}]
  %s1 = inlined_call_operand.hbm [shape: f32[32,36], index: 1, kind: input, shape index: {}]
  %s2 = inlined_call_operand.hbm [shape: f32[9,256], index: 2, kind: input, shape index: {}]
  %s3 = inlined_call_operand.hbm [shape: f32[2,32,256], index: 3, kind: output, shape index: {}]
  %s4 = sld [smem:[#allocation0]]
  $region57: #{tpu_custom_call.1} parent=0
    _
  %s6 = ssub.s32 1, %s4
  %s7 = scalar_select 0, %s6, %s4
  $region1: #{tpu_custom_call.1} parent=0
    #allocation3 [shape = 'u8[8192]{0}', space=vmem, size = 0x2000, scoped, tag = 'input window, operand 0']
    #allocation4 [shape = 's32[2]{0}', space=sflag, size = 0x8, scoped, tag = 'scoped memory for tpu_custom_call.1']
    #allocation5 [shape = 's32[2]{0}', space=sflag, size = 0x8, scoped, tag = 'scoped memory for tpu_custom_call.1']
    #allocation6 [shape = 'u8[16384]{0}', space=vmem, size = 0x4000, scoped, tag = 'input window, operand 1, single buffered']
    #allocation7 [shape = 's32[1]{0}', space=sflag, size = 0x4, scoped, tag = 'scoped memory for tpu_custom_call.1']
    #allocation8 [shape = 'u8[16384]{0}', space=vmem, size = 0x4000, scoped, tag = 'input window, operand 2, single buffered']
    #allocation9 [shape = 'u8[65536]{0}', space=vmem, size = 0x10000, scoped, tag = 'output window, operand 0']
    %8 = vsyncpa [#allocation4], 0
    %s9 = scalar_lea.sflag [#allocation4], 1
    %10 = vsyncpa %s9, 0
    %11 = vsyncpa [#allocation7], 0
    %12 = vsyncpa [#allocation5], 0
    %s13 = scalar_lea.sflag [#allocation5], 1
    %14 = vsyncpa %s13, 0
    loop: start=0, step=1, limit=4
    $region2: #{tpu_custom_call.1} parent=1 // loop_pre_header
      _
    $region3: #{tpu_custom_call.1} parent=1 // loop_header
      %s16 = sphi 0, %s20
      %p17 = scmp.ge.s32.totalorder %s16, 4
      %s26 = sphi 0, %s28
      %s29 = sphi 0, %s26
      %s30 = sphi 0, %s29
      %s46 = sphi 0, %s30
      %s50 = sphi 0, %s50
      %s52 = sphi 0, %s50
      %s53 = sphi 0, %s52
      %s67 = sphi 0, %s53
      %s71 = sphi 0, %s71
      %s73 = sphi 0, %s71
      %s74 = sphi 0, %s73
      %s88 = sphi 0, %s74
      %s94 = sphi 0, %s96
      %s97 = sphi 0, %s94
      %s98 = sphi 0, %s97
      %s114 = sphi 0, %s98
    $region4: #{tpu_custom_call.1} parent=1 // loop_header_branch
      %19 = sbr.rel (%p17) target = $region8
    $region5: #{tpu_custom_call.1} parent=1 // loop_body
      %s21 = ssub.s32 %s16, 1
      %s22 = ssub.s32 %s16, 2
      %s23 = sadd.s32 %s16, 1
      %s24 = ssub.s32 %s16, %s23
      %p25 = scmp.eq.s32.totalorder %s24, 0
      %s27 = sadd.s32 %s26, 1
      %s28 = scalar_select %p25, %s26, %s27
      %p31 = pneg %p25
      %p32 = scmp.eq.s32.totalorder %s16, 1
      %p33 = por %p31, %p32
      %p34 = scmp.ne.s32.totalorder %s26, %s29
      %p35 = scmp.eq.s32.totalorder %s16, 0
      %p36 = por %p34, %p35
      %p37 = scmp.ne.s32.totalorder %s26, %s29
      %p38 = scmp.eq.s32.totalorder %s21, 1
      %p39 = por %p37, %p38
      %p40 = scmp.ne.s32.totalorder %s29, %s30
      %p41 = scmp.eq.s32.totalorder %s21, 0
      %p42 = por %p40, %p41
      %p43 = scmp.ne.s32.totalorder %s29, %s30
      %p44 = scmp.eq.s32.totalorder %s22, 1
      %p45 = por %p43, %p44
      %p47 = scmp.ne.s32.totalorder %s30, %s46
      %p48 = scmp.eq.s32.totalorder %s22, 0
      %p49 = por %p47, %p48
      %s51 = sadd.s32 %s50, 1
      %p54 = scmp.eq.s32.totalorder %s16, 1
      %p55 = scmp.ne.s32.totalorder %s50, %s52
      %p56 = scmp.eq.s32.totalorder %s16, 0
      %p57 = por %p55, %p56
      %p58 = scmp.ne.s32.totalorder %s50, %s52
      %p59 = scmp.eq.s32.totalorder %s21, 1
      %p60 = por %p58, %p59
      %p61 = scmp.ne.s32.totalorder %s52, %s53
      %p62 = scmp.eq.s32.totalorder %s21, 0
      %p63 = por %p61, %p62
      %p64 = scmp.ne.s32.totalorder %s52, %s53
      %p65 = scmp.eq.s32.totalorder %s22, 1
      %p66 = por %p64, %p65
      %p68 = scmp.ne.s32.totalorder %s53, %s67
      %p69 = scmp.eq.s32.totalorder %s22, 0
      %p70 = por %p68, %p69
      %s72 = sadd.s32 %s71, 1
      %p75 = scmp.eq.s32.totalorder %s16, 1
      %p76 = scmp.ne.s32.totalorder %s71, %s73
      %p77 = scmp.eq.s32.totalorder %s16, 0
      %p78 = por %p76, %p77
      %p79 = scmp.ne.s32.totalorder %s71, %s73
      %p80 = scmp.eq.s32.totalorder %s21, 1
      %p81 = por %p79, %p80
      %p82 = scmp.ne.s32.totalorder %s73, %s74
      %p83 = scmp.eq.s32.totalorder %s21, 0
      %p84 = por %p82, %p83
      %p85 = scmp.ne.s32.totalorder %s73, %s74
      %p86 = scmp.eq.s32.totalorder %s22, 1
      %p87 = por %p85, %p86
      %p89 = scmp.ne.s32.totalorder %s74, %s88
      %p90 = scmp.eq.s32.totalorder %s22, 0
      %p91 = por %p89, %p90
      %s92 = ssub.s32 %s16, %s23
      %p93 = scmp.eq.s32.totalorder %s92, 0
      %s95 = sadd.s32 %s94, 1
      %s96 = scalar_select %p93, %s94, %s95
      %p99 = pneg %p93
      %p100 = scmp.eq.s32.totalorder %s16, 1
      %p101 = por %p99, %p100
      %p102 = scmp.ne.s32.totalorder %s94, %s97
      %p103 = scmp.eq.s32.totalorder %s16, 0
      %p104 = por %p102, %p103
      %p105 = scmp.ne.s32.totalorder %s94, %s97
      %p106 = scmp.eq.s32.totalorder %s21, 1
      %p107 = por %p105, %p106
      %p108 = scmp.ne.s32.totalorder %s97, %s98
      %p109 = scmp.eq.s32.totalorder %s21, 0
      %p110 = por %p108, %p109
      %p111 = scmp.ne.s32.totalorder %s97, %s98
      %p112 = scmp.eq.s32.totalorder %s22, 1
      %p113 = por %p111, %p112
      %p115 = scmp.ne.s32.totalorder %s98, %s114
      %p116 = scmp.eq.s32.totalorder %s22, 0
      %p117 = por %p115, %p116
      %p118 = scmp.le.s32.totalorder 1, %s16
      %p119 = scmp.lt.s32.totalorder %s16, 3
      %p120 = pnand %p118, %p119
      %p121 = pneg %p120
      // Predicated region
      $region9: #{tpu_custom_call.1} parent=5 // pred_check
        _
      $region10: #{tpu_custom_call.1} parent=5 // pred_check_branch
        %123 = sbr.rel (%p120) target = $region12
      $region11: #{tpu_custom_call.1} parent=5 // pred_region
        %s124 = ssub.s32 %s16, 1
        // Predicated region
        $region13: #{tpu_custom_call.1} parent=11 // pred_check
          %p125 = pneg %p63
        $region14: #{tpu_custom_call.1} parent=11 // pred_check_branch
          %127 = sbr.rel (%p125) target = $region16
        $region15: #{tpu_custom_call.1} parent=11 // pred_region
          %s129 = ssub.s32 512, 512
          %130 = vsyncadd [#allocation7], %s129
          %s131 = sshll.u32 [#allocation6], 4
          %s132 = int_to_ptr.vmem [resolvable:$true] %s131
          %137 = dma.hbm_to_vmem [thread:$0]  %s1, 512, %s132, [#allocation7], 128, 128, 8
        $region16: #{tpu_custom_call.1} parent=11 // pred_fallthru
          _
        // Predicated region
        $region17: #{tpu_custom_call.1} parent=11 // pred_check
          %p138 = pneg %p84
        $region18: #{tpu_custom_call.1} parent=11 // pred_check_branch
          %140 = sbr.rel (%p138) target = $region20
        $region19: #{tpu_custom_call.1} parent=11 // pred_region
          %s142 = ssub.s32 512, 512
          %143 = vsyncadd [#allocation7], %s142
          %s144 = sshll.u32 [#allocation8], 4
          %s145 = int_to_ptr.vmem [resolvable:$true] %s144
          %150 = dma.hbm_to_vmem [thread:$0]  %s2, 512, %s145, [#allocation7], 256, 256, 16
        $region20: #{tpu_custom_call.1} parent=11 // pred_fallthru
          _
      $region12: #{tpu_custom_call.1} parent=5 // pred_fallthru
        _
      %p151 = scmp.lt.s32.totalorder %s16, 2
      // Predicated region
      $region21: #{tpu_custom_call.1} parent=5 // pred_check
        %p152 = pneg %p151
      $region22: #{tpu_custom_call.1} parent=5 // pred_check_branch
        %154 = sbr.rel (%p152) target = $region24
      $region23: #{tpu_custom_call.1} parent=5 // pred_region
        // Predicated region
        $region25: #{tpu_custom_call.1} parent=23 // pred_check
          %p155 = pneg %p36
        $region26: #{tpu_custom_call.1} parent=23 // pred_check_branch
          %157 = sbr.rel (%p155) target = $region28
        $region27: #{tpu_custom_call.1} parent=23 // pred_region
          %s158 = sand.u32 %s26, 1
          %s159 = scalar_lea.sflag [#allocation4], %s158
          %s160 = sand.u32 %s26, 1
          %s161 = smul.addr %s160, 8
          %s162 = scalar_lea.vmem [#allocation3], %s161
          %s164 = ssub.s32 128, 128
          %165 = vsyncadd %s159, %s164
          %s166 = smul.addr %s16, 2
          %s167 = smul.addr %s166, 64
          %s168 = scalar_lea.hbm %s0, %s167
          %s170 = sshll.u32 %s162, 4
          %s171 = int_to_ptr.vmem [resolvable:$true] %s170
          %173 = dma.hbm_to_vmem [thread:$0]  %s168, 128, %s171, %s159
        $region28: #{tpu_custom_call.1} parent=23 // pred_fallthru
          _
      $region24: #{tpu_custom_call.1} parent=5 // pred_fallthru
        _
      %p174 = scmp.le.s32.totalorder 1, %s16
      %p175 = scmp.lt.s32.totalorder %s16, 3
      %p176 = pnand %p174, %p175
      %p177 = pneg %p176
      // Predicated region
      $region29: #{tpu_custom_call.1} parent=5 // pred_check
        _
      $region30: #{tpu_custom_call.1} parent=5 // pred_check_branch
        %179 = sbr.rel (%p176) target = $region32
      $region31: #{tpu_custom_call.1} parent=5 // pred_region
        %s180 = ssub.s32 %s16, 1
        %s181 = sand.u32 %s29, 1
        %s182 = scalar_lea.sflag [#allocation4], %s181
        %s183 = sand.u32 %s29, 1
        %s184 = smul.addr %s183, 8
        %s185 = scalar_lea.vmem [#allocation3], %s184
        // Predicated region
        $region33: #{tpu_custom_call.1} parent=31 // pred_check
          %p186 = pneg %p42
        $region34: #{tpu_custom_call.1} parent=31 // pred_check_branch
          %188 = sbr.rel (%p186) target = $region36
        $region35: #{tpu_custom_call.1} parent=31 // pred_region
          %189 = dma.done %s182, 128
        $region36: #{tpu_custom_call.1} parent=31 // pred_fallthru
          _
        // Predicated region
        $region37: #{tpu_custom_call.1} parent=31 // pred_check
          %p190 = pneg %p63
        $region38: #{tpu_custom_call.1} parent=31 // pred_check_branch
          %192 = sbr.rel (%p190) target = $region40
        $region39: #{tpu_custom_call.1} parent=31 // pred_region
          %193 = dma.done [#allocation7], 512
        $region40: #{tpu_custom_call.1} parent=31 // pred_fallthru
          _
        // Predicated region
        $region41: #{tpu_custom_call.1} parent=31 // pred_check
          %p194 = pneg %p84
        $region42: #{tpu_custom_call.1} parent=31 // pred_check_branch
          %196 = sbr.rel (%p194) target = $region44
        $region43: #{tpu_custom_call.1} parent=31 // pred_region
          %197 = dma.done [#allocation7], 512
        $region44: #{tpu_custom_call.1} parent=31 // pred_fallthru
          _
        %s198 = sand.u32 %s29, 1
        %s199 = scalar_lea.sflag [#allocation4], %s198
        %s200 = sand.u32 %s29, 1
        %s201 = smul.addr %s200, 8
        %s202 = scalar_lea.vmem [#allocation3], %s201
        %p203 = pneg %p42
        %p204 = pneg %p39
        %p205 = pneg %p63
        %p206 = pneg %p60
        %p207 = pneg %p84
        %p208 = pneg %p81
        %p209 = pneg %p110
        %p210 = pneg %p107
        %s211 = sand.u32 %s97, 1
        %s212 = scalar_lea.sflag [#allocation5], %s211
        %s213 = sand.u32 %s97, 1
        %s214 = smul.addr %s213, 64
        %s215 = scalar_lea.vmem [#allocation9], %s214
        %v216 = vld [vmem:[%s185] sm:$0xff]
        %v218 = vcombine.high %v216, %v216
        %220 = vrot.lane.b32.xlu0 %v216, 17
        %v221 = vpop.permute.xlu0 %220
        %222 = vrot.lane.b32.xlu0 %v218, 17
        %v223 = vpop.permute.xlu0 %222
        %v224 = vlaneseq
        %v225 = vand.u32 %v224, 127
        %vm226 = vcmp.lt.s32.totalorder %v225, 17
        %v227 = vsel %vm226, %v221, %v223
        %v228 = vsel %vm226, %v223, %v221
        %v229 = vld [vmem:[#allocation8] ss:$8 sm:$0x3]
        %v231 = vlaneseq
        %v232 = vshrl.u32 %v231, 7
        %v233 = vsub.s32 0, %v232
        %v234 = vrot.slane %v229, %v233
        %v235 = vlaneseq
        %v236 = vshrl.u32 %v235, 7
        %v237 = vsub.s32 1, %v236
        %v238 = vrot.slane %v229, %v237
        %v241 = vmul.f32 %v228, %v234
        %v242 = vmul.f32 %v227, %v238
        %243 = vst [vmem:[#allocation2] sm:$0xf] %v241
        %244 = vst [vmem:[#allocation2 + $0x8] sm:$0xf] %v242
        %245 = vrot.lane.b32.xlu0 %v216, 16
        %v246 = vpop.permute.xlu0 %245
        %247 = vrot.lane.b32.xlu0 %v218, 16
        %v248 = vpop.permute.xlu0 %247
        %vm249 = vcmp.lt.s32.totalorder %v225, 16
        %v250 = vsel %vm249, %v246, %v248
        %v251 = vsel %vm249, %v248, %v246
        %s252 = scalar_lea.vmem [#allocation8], 1
        %v253 = vld [vmem:[%s252] ss:$8 sm:$0x3]
        %v255 = vlaneseq
        %v256 = vshrl.u32 %v255, 7
        %v257 = vsub.s32 0, %v256
        %v258 = vrot.slane %v253, %v257
        %v259 = vlaneseq
        %v260 = vshrl.u32 %v259, 7
        %v261 = vsub.s32 1, %v260
        %v262 = vrot.slane %v253, %v261
        %v265 = vmul.f32 %v251, %v258
        %v266 = vmul.f32 %v250, %v262
        %v269 = vrot.slane %v265, 4
        %v270 = vrot.slane %v266, 4
        %273 = vst [vmem:[#allocation2] sm:$0xf0] %v269
        %274 = vst [vmem:[#allocation2 + $0x8] sm:$0xf0] %v270
        %275 = vrot.lane.b32.xlu0 %v216, 15
        %v276 = vpop.permute.xlu0 %275
        %277 = vrot.lane.b32.xlu0 %v218, 15
        %v278 = vpop.permute.xlu0 %277
        %vm279 = vcmp.lt.s32.totalorder %v225, 15
        %v280 = vsel %vm279, %v276, %v278
        %v281 = vsel %vm279, %v278, %v276
        %s282 = scalar_lea.vmem [#allocation8], 2
        %v283 = vld [vmem:[%s282] ss:$8 sm:$0x3]
        %v285 = vlaneseq
        %v286 = vshrl.u32 %v285, 7
        %v287 = vsub.s32 0, %v286
        %v288 = vrot.slane %v283, %v287
        %v289 = vlaneseq
        %v290 = vshrl.u32 %v289, 7
        %v291 = vsub.s32 1, %v290
        %v292 = vrot.slane %v283, %v291
        %v295 = vmul.f32 %v281, %v288
        %v296 = vmul.f32 %v280, %v292
        %297 = vst [vmem:[#allocation2 + $0x10] sm:$0xf] %v295
        %298 = vst [vmem:[#allocation2 + $0x18] sm:$0xf] %v296
        %299 = vrot.lane.b32.xlu0 %v216, 1
        %v300 = vpop.permute.xlu0 %299
        %301 = vrot.lane.b32.xlu0 %v218, 1
        %v302 = vpop.permute.xlu0 %301
        %vm303 = vcmp.lt.s32.totalorder %v225, 1
        %v304 = vsel %vm303, %v300, %v302
        %v305 = vsel %vm303, %v302, %v300
        %s306 = scalar_lea.vmem [#allocation8], 3
        %v307 = vld [vmem:[%s306] ss:$8 sm:$0x3]
        %v309 = vlaneseq
        %v310 = vshrl.u32 %v309, 7
        %v311 = vsub.s32 0, %v310
        %v312 = vrot.slane %v307, %v311
        %v313 = vlaneseq
        %v314 = vshrl.u32 %v313, 7
        %v315 = vsub.s32 1, %v314
        %v316 = vrot.slane %v307, %v315
        %v319 = vmul.f32 %v305, %v312
        %v320 = vmul.f32 %v304, %v316
        %v323 = vrot.slane %v319, 4
        %v324 = vrot.slane %v320, 4
        %327 = vst [vmem:[#allocation2 + $0x10] sm:$0xf0] %v323
        %328 = vst [vmem:[#allocation2 + $0x18] sm:$0xf0] %v324
        %s329 = scalar_lea.vmem [#allocation8], 4
        %v330 = vld [vmem:[%s329] ss:$8 sm:$0x3]
        %v332 = vlaneseq
        %v333 = vshrl.u32 %v332, 7
        %v334 = vsub.s32 0, %v333
        %v335 = vrot.slane %v330, %v334
        %v336 = vlaneseq
        %v337 = vshrl.u32 %v336, 7
        %v338 = vsub.s32 1, %v337
        %v339 = vrot.slane %v330, %v338
        %v340 = vcombine.low %v335, %v339
        %v342 = vmul.f32 %v216, %v340
        %v344 = vcombine.high %v342, %v342
        %346 = vst [vmem:[#allocation2 + $0x20] sm:$0xf] %v342
        %347 = vst [vmem:[#allocation2 + $0x28] sm:$0xf] %v344
        %348 = vrot.lane.b32.xlu0 %v216, 127
        %v349 = vpop.permute.xlu0 %348
        %350 = vrot.lane.b32.xlu0 %v218, 127
        %v351 = vpop.permute.xlu0 %350
        %vm352 = vcmp.lt.s32.totalorder %v225, 127
        %v353 = vsel %vm352, %v349, %v351
        %v354 = vsel %vm352, %v351, %v349
        %s355 = scalar_lea.vmem [#allocation8], 5
        %v356 = vld [vmem:[%s355] ss:$8 sm:$0x3]
        %v358 = vlaneseq
        %v359 = vshrl.u32 %v358, 7
        %v360 = vsub.s32 0, %v359
        %v361 = vrot.slane %v356, %v360
        %v362 = vlaneseq
        %v363 = vshrl.u32 %v362, 7
        %v364 = vsub.s32 1, %v363
        %v365 = vrot.slane %v356, %v364
        %v368 = vmul.f32 %v353, %v361
        %v369 = vmul.f32 %v354, %v365
        %v372 = vrot.slane %v368, 4
        %v373 = vrot.slane %v369, 4
        %376 = vst [vmem:[#allocation2 + $0x20] sm:$0xf0] %v372
        %377 = vst [vmem:[#allocation2 + $0x28] sm:$0xf0] %v373
        %378 = vrot.lane.b32.xlu0 %v216, 113
        %v379 = vpop.permute.xlu0 %378
        %380 = vrot.lane.b32.xlu0 %v218, 113
        %v381 = vpop.permute.xlu0 %380
        %vm382 = vcmp.lt.s32.totalorder %v225, 113
        %v383 = vsel %vm382, %v379, %v381
        %v384 = vsel %vm382, %v381, %v379
        %s385 = scalar_lea.vmem [#allocation8], 6
        %v386 = vld [vmem:[%s385] ss:$8 sm:$0x3]
        %v388 = vlaneseq
        %v389 = vshrl.u32 %v388, 7
        %v390 = vsub.s32 0, %v389
        %v391 = vrot.slane %v386, %v390
        %v392 = vlaneseq
        %v393 = vshrl.u32 %v392, 7
        %v394 = vsub.s32 1, %v393
        %v395 = vrot.slane %v386, %v394
        %v398 = vmul.f32 %v383, %v391
        %v399 = vmul.f32 %v384, %v395
        %400 = vst [vmem:[#allocation2 + $0x30] sm:$0xf] %v398
        %401 = vst [vmem:[#allocation2 + $0x38] sm:$0xf] %v399
        %402 = vrot.lane.b32.xlu0 %v216, 112
        %v403 = vpop.permute.xlu0 %402
        %404 = vrot.lane.b32.xlu0 %v218, 112
        %v405 = vpop.permute.xlu0 %404
        %vm406 = vcmp.lt.s32.totalorder %v225, 112
        %v407 = vsel %vm406, %v403, %v405
        %v408 = vsel %vm406, %v405, %v403
        %s409 = scalar_lea.vmem [#allocation8], 7
        %v410 = vld [vmem:[%s409] ss:$8 sm:$0x3]
        %v412 = vlaneseq
        %v413 = vshrl.u32 %v412, 7
        %v414 = vsub.s32 0, %v413
        %v415 = vrot.slane %v410, %v414
        %v416 = vlaneseq
        %v417 = vshrl.u32 %v416, 7
        %v418 = vsub.s32 1, %v417
        %v419 = vrot.slane %v410, %v418
        %v422 = vmul.f32 %v407, %v415
        %v423 = vmul.f32 %v408, %v419
        %v426 = vrot.slane %v422, 4
        %v427 = vrot.slane %v423, 4
        %430 = vst [vmem:[#allocation2 + $0x30] sm:$0xf0] %v426
        %431 = vst [vmem:[#allocation2 + $0x38] sm:$0xf0] %v427
        %432 = vrot.lane.b32.xlu0 %v216, 111
        %v433 = vpop.permute.xlu0 %432
        %434 = vrot.lane.b32.xlu0 %v218, 111
        %v435 = vpop.permute.xlu0 %434
        %vm436 = vcmp.lt.s32.totalorder %v225, 111
        %v437 = vsel %vm436, %v433, %v435
        %v438 = vsel %vm436, %v435, %v433
        %s439 = scalar_lea.vmem [#allocation8], 16
        %v440 = vld [vmem:[%s439] ss:$8 sm:$0x3]
        %v442 = vlaneseq
        %v443 = vshrl.u32 %v442, 7
        %v444 = vsub.s32 0, %v443
        %v445 = vrot.slane %v440, %v444
        %v446 = vlaneseq
        %v447 = vshrl.u32 %v446, 7
        %v448 = vsub.s32 1, %v447
        %v449 = vrot.slane %v440, %v448
        %v452 = vmul.f32 %v437, %v445
        %v453 = vmul.f32 %v438, %v449
        %454 = vst [vmem:[#allocation2 + $0x40] sm:$0xf] %v452
        %455 = vst [vmem:[#allocation2 + $0x48] sm:$0xf] %v453
        %v456 = vld [vmem:[#allocation6] sm:$0xff]
        %v457 = vld [vmem:[#allocation6 + $0x8] sm:$0xff]
        %v458 = vld [vmem:[#allocation6 + $0x10] sm:$0xff]
        %v459 = vld [vmem:[#allocation6 + $0x18] sm:$0xff]
        %v460 = vld [vmem:[#allocation2] sm:$0xff]
        %v461 = vld [vmem:[#allocation2 + $0x8] sm:$0xff]
        %v462 = vld [vmem:[#allocation2 + $0x10] sm:$0xff]
        %v463 = vld [vmem:[#allocation2 + $0x18] sm:$0xff]
        %v464 = vld [vmem:[#allocation2 + $0x20] sm:$0xff]
        %v465 = vld [vmem:[#allocation2 + $0x28] sm:$0xff]
        %v466 = vld [vmem:[#allocation2 + $0x30] sm:$0xff]
        %v467 = vld [vmem:[#allocation2 + $0x38] sm:$0xff]
        %v468 = vld [vmem:[#allocation2 + $0x40] sm:$0xf]
        %v469 = vld [vmem:[#allocation2 + $0x48] sm:$0xf]
        %vm470 = vcmask 293888
        %v472 = vsel %vm470, %v456, 0
        %v475 = vsel %vm470, %v457, 0
        %v478 = vsel %vm470, %v458, 0
        %v481 = vsel %vm470, %v459, 0
        %vm483 = vcmask 1043456
        %v485 = vsel %vm483, %v468, 0
        %v488 = vsel %vm483, %v469, 0
        %490 = vmatprep.subr.mxu0 0.0
        %491 = vmatpush1.msra.mxu0 0.0
        %492 = vmatprep.subr.mxu0 0.0
        %493 = vmatpush1.msra.mxu0 0.0
        %494 = vmatprep.subr.mxu0 0.0
        %495 = vmatpush1.msra.mxu0 0.0
        %496 = vmatprep.subr.mxu0 0.0
        %497 = vmatpush1.msra.mxu0 0.0
        %498 = vmatprep.subr.mxu0 0.0
        %499 = vmatpush1.msra.mxu0 0.0
        %500 = vmatprep.subr.mxu0 0.0
        %501 = vmatpush1.msra.mxu0 0.0
        %502 = vmatprep.subr.mxu0 0.0
        %503 = vmatpush1.msra.mxu0 0.0
        %504 = vmatprep.subr.mxu0 0.0
        %505 = vmatpush1.msra.mxu0 0.0
        %506 = vmatprep.subr.mxu0 0.0
        %507 = vmatpush1.msra.mxu0 0.0
        %508 = vmatprep.subr.mxu0 0.0
        %509 = vmatpush1.msra.mxu0 0.0
        %510 = vmatprep.subr.mxu0 0.0
        %511 = vmatpush1.msra.mxu0 0.0
        %512 = vmatprep.subr.mxu0 %v488
        %513 = vmatpush1.msra.mxu0 %v485
        %514 = vmatprep.subr.mxu0 %v467
        %515 = vmatpush1.msra.mxu0 %v466
        %516 = vmatprep.subr.mxu0 %v465
        %517 = vmatpush1.msra.mxu0 %v464
        %518 = vmatprep.subr.mxu0 %v463
        %519 = vmatpush1.msra.mxu0 %v462
        %520 = vmatprep.subr.mxu0 %v461
        %521 = vmatpush1.msra.mxu0 %v460
        %522 = vmatprep.subr.mxu0 0.0
        %523 = vmatpush2.msra.mxu0 0.0
        %524 = vmatprep.subr.mxu0 0.0
        %525 = vmatpush2.msra.mxu0 0.0
        %526 = vmatprep.subr.mxu0 0.0
        %527 = vmatpush2.msra.mxu0 0.0
        %528 = vmatprep.subr.mxu0 0.0
        %529 = vmatpush2.msra.mxu0 0.0
        %530 = vmatprep.subr.mxu0 0.0
        %531 = vmatpush2.msra.mxu0 0.0
        %532 = vmatprep.subr.mxu0 0.0
        %533 = vmatpush2.msra.mxu0 0.0
        %534 = vmatprep.subr.mxu0 0.0
        %535 = vmatpush2.msra.mxu0 0.0
        %536 = vmatprep.subr.mxu0 0.0
        %537 = vmatpush2.msra.mxu0 0.0
        %538 = vmatprep.subr.mxu0 0.0
        %539 = vmatpush2.msra.mxu0 0.0
        %540 = vmatprep.subr.mxu0 0.0
        %541 = vmatpush2.msra.mxu0 0.0
        %542 = vmatprep.subr.mxu0 0.0
        %543 = vmatpush2.msra.mxu0 0.0
        %544 = vmatprep.subr.mxu0 0.0
        %545 = vmatpush2.msra.mxu0 0.0
        %546 = vmatprep.subr.mxu0 0.0
        %547 = vmatpush2.msra.mxu0 0.0
        %548 = vmatprep.subr.mxu0 0.0
        %549 = vmatpush2.msra.mxu0 0.0
        %550 = vmatprep.subr.mxu0 0.0
        %551 = vmatpush2.msra.mxu0 0.0
        %552 = vmatprep.subr.mxu0 0.0
        %553 = vmatpush2.msra.mxu0 0.0
        %554 = vmatprep.mubr.f32.mxu0 0.0
        %555 = vmatmul.mubr.f32.gmra.mxu0 %v472
        %v556 = vpop.f32.mrf.mxu0
        %v557 = vadd.f32 0.0, %v556
        %v558 = vpop.f32.mrf.mxu0
        %v559 = vadd.f32 0.0, %v558
        %560 = vmatprep.mubr.f32.mxu0 0.0
        %561 = vmatmul.mubr.f32.gmra.mxu0 %v475
        %v562 = vpop.f32.mrf.mxu0
        %v563 = vadd.f32 0.0, %v562
        %v564 = vpop.f32.mrf.mxu0
        %v565 = vadd.f32 0.0, %v564
        %566 = vmatprep.mubr.f32.mxu0 0.0
        %567 = vmatmul.mubr.f32.gmra.mxu0 %v478
        %v568 = vpop.f32.mrf.mxu0
        %v569 = vadd.f32 0.0, %v568
        %v570 = vpop.f32.mrf.mxu0
        %v571 = vadd.f32 0.0, %v570
        %572 = vmatprep.mubr.f32.mxu0 0.0
        %573 = vmatmul.mubr.f32.gmra.mxu0 %v481
        %v574 = vpop.f32.mrf.mxu0
        %v575 = vadd.f32 0.0, %v574
        %v576 = vpop.f32.mrf.mxu0
        %v577 = vadd.f32 0.0, %v576
        %578 = vdwg.mxu0
        %579 = vst [vmem:[%s215] sm:$0xff] %v557
        %580 = vst [vmem:[%s215 + $0x8] sm:$0xff] %v559
        %581 = vst [vmem:[%s215 + $0x10] sm:$0xff] %v563
        %582 = vst [vmem:[%s215 + $0x18] sm:$0xff] %v565
        %583 = vst [vmem:[%s215 + $0x20] sm:$0xff] %v569
        %584 = vst [vmem:[%s215 + $0x28] sm:$0xff] %v571
        %585 = vst [vmem:[%s215 + $0x30] sm:$0xff] %v575
        %586 = vst [vmem:[%s215 + $0x38] sm:$0xff] %v577
        %s587 = sand.u32 %s97, 1
        %s588 = scalar_lea.sflag [#allocation5], %s587
        %s589 = sand.u32 %s97, 1
        %s590 = smul.addr %s589, 64
        %s591 = scalar_lea.vmem [#allocation9], %s590
        // Predicated region
        $region45: #{tpu_custom_call.1} parent=31 // pred_check
          %p592 = pneg %p107
        $region46: #{tpu_custom_call.1} parent=31 // pred_check_branch
          %594 = sbr.rel (%p592) target = $region48
        $region47: #{tpu_custom_call.1} parent=31 // pred_region
          %s596 = ssub.s32 1024, 1024
          %597 = vsyncadd %s588, %s596
          %s598 = smul.addr %s21, 8
          %s599 = smul.addr %s598, 128
          %s600 = scalar_lea.hbm %s3, %s599
          %s601 = sshll.u32 %s591, 4
          %s602 = int_to_ptr.vmem [resolvable:$true] %s601
          %607 = dma.vmem_to_hbm [thread:$0]  %s602, 1024, %s600, %s588, 256, 256, 16
        $region48: #{tpu_custom_call.1} parent=31 // pred_fallthru
          _
      $region32: #{tpu_custom_call.1} parent=5 // pred_fallthru
        _
      %p608 = scmp.le.s32.totalorder 2, %s16
      // Predicated region
      $region49: #{tpu_custom_call.1} parent=5 // pred_check
        %p609 = pneg %p608
      $region50: #{tpu_custom_call.1} parent=5 // pred_check_branch
        %611 = sbr.rel (%p609) target = $region52
      $region51: #{tpu_custom_call.1} parent=5 // pred_region
        %s612 = ssub.s32 %s16, 2
        // Predicated region
        $region53: #{tpu_custom_call.1} parent=51 // pred_check
          %p613 = pneg %p113
        $region54: #{tpu_custom_call.1} parent=51 // pred_check_branch
          %615 = sbr.rel (%p613) target = $region56
        $region55: #{tpu_custom_call.1} parent=51 // pred_region
          %s616 = sand.u32 %s98, 1
          %s617 = scalar_lea.sflag [#allocation5], %s616
          %s618 = sand.u32 %s98, 1
          %s619 = smul.addr %s618, 64
          %s620 = scalar_lea.vmem [#allocation9], %s619
          %621 = dma.done %s617, 1024
        $region56: #{tpu_custom_call.1} parent=51 // pred_fallthru
          _
      $region52: #{tpu_custom_call.1} parent=5 // pred_fallthru
        _
    $region6: #{tpu_custom_call.1} parent=1 // loop_footer
      %s20 = sadd.s32 1, %s16
    $region7: #{tpu_custom_call.1} parent=1 // loop_footer_branch
      %15 = sbr.rel target = $region3
    $region8: #{tpu_custom_call.1} parent=1 // loop_exit
      _
    %622 = vsyncpa [#allocation4], 1
    %s623 = scalar_lea.sflag [#allocation4], 1
    %624 = vsyncpa %s623, 1
    %625 = vsyncpa [#allocation7], 1
    %626 = vsyncpa [#allocation5], 1
    %s627 = scalar_lea.sflag [#allocation5], 1
    %628 = vsyncpa %s627, 1

</llo_original>
